<compile_context>
chip_gen: v5e
topology: v5e:2x2
jax: 0.10.0
libtpu: 0.0.40
codegen_flags: <defaults>
</compile_context>

<pallas_src>
import jax
import jax.numpy as jnp
from jax import lax
from jax.experimental import pallas as pl
from jax.experimental.pallas import tpu as pltpu

# ----- cfg (deterministic, in-script) -----
NUM_CLASSES = 8
BACKGROUND_LABEL = 0
NEGPOS_RATIO = 3
MATCHED_THRESHOLD = 0.5
VARIANCE = (0.1, 0.2)


# ---------------------------------------------------------------------------
# Fused per-image MultiBoxLoss kernel (grid axis = batch)
# ---------------------------------------------------------------------------
def multibox_kernel(conf_ref, loc_ref, prior_ref, tgt_ref, out_ref):
    """Per-image MultiBoxLoss partial sums.

    conf_ref : [1, C, P] f32  class scores (classes on sublanes, priors on lanes)
    loc_ref  : [1, 4, P] f32  predicted offsets, coordinate-major
    prior_ref: [8, P]    f32  rows 0-3 center (cx,cy,w,h), rows 4-7 corner (x1,y1,x2,y2)
    tgt_ref  : [1, O, 5] f32  GT rows (x1,y1,x2,y2,label); label < 0 marks padding
    out_ref  : [1, 8, 128] f32  lanes 0..2 of row 0: (loss_l_sum, loss_c_sum, num_pos)
    """
    C, P = conf_ref.shape[1], conf_ref.shape[2]
    O = tgt_ref.shape[1]
    v0, v1 = VARIANCE

    pr = prior_ref[...]                                        # [8, P]
    pcx, pcy, pw, ph = pr[0], pr[1], pr[2], pr[3]              # [P]
    px1, py1, px2, py2 = pr[4], pr[5], pr[6], pr[7]            # [P]

    tgt = tgt_ref[0]                                           # [O, 5]
    tx1, ty1 = tgt[:, 0:1], tgt[:, 1:2]                        # [O, 1]
    tx2, ty2 = tgt[:, 2:3], tgt[:, 3:4]                        # [O, 1]
    lab = tgt[:, 4:5].astype(jnp.int32)                        # [O, 1]
    valid = lab >= 0                                           # [O, 1] padded GT mask

    # ---------------- IoU(gt, priors): [O, P] ----------------
    iw = jnp.maximum(jnp.minimum(tx2, px2[None, :]) - jnp.maximum(tx1, px1[None, :]), 0.0)
    ih = jnp.maximum(jnp.minimum(ty2, py2[None, :]) - jnp.maximum(ty1, py1[None, :]), 0.0)
    inter = iw * ih                                            # [O, P]
    area_t = (tx2 - tx1) * (ty2 - ty1)                         # [O, 1]
    area_p = ((px2 - px1) * (py2 - py1))[None, :]              # [1, P]
    overlaps = jnp.where(valid, inter / (area_t + area_p - inter), -1.0)   # [O, P]

    # ---------------- match_gious ----------------
    lane_ids = lax.broadcasted_iota(jnp.int32, (O, P), 1)
    gt_ids = lax.broadcasted_iota(jnp.int32, (O, P), 0)

    # best prior per GT (argmax over P, first-max tie break)
    bp_max = jnp.max(overlaps, axis=1, keepdims=True)                           # [O,1]
    best_prior_idx = jnp.min(jnp.where(overlaps == bp_max, lane_ids, P),
                             axis=1, keepdims=True)                             # [O,1]

    # best GT per prior (argmax over O)
    bt_max = jnp.max(overlaps, axis=0)                                          # [P]
    best_truth_idx = jnp.min(
        jnp.where(overlaps == bt_max[None, :], gt_ids, O), axis=0)              # [P]

    # force-assign each valid GT its best prior (later GT wins, like torch loop)
    prior_hit = (best_prior_idx == lane_ids) & valid                            # [O,P]
    forced_j = jnp.max(jnp.where(prior_hit, gt_ids, -1), axis=0)                # [P]
    is_forced = forced_j >= 0
    best_truth_idx = jnp.where(is_forced, forced_j, best_truth_idx)
    best_truth_overlap = jnp.where(is_forced, 2.0, bt_max)                      # [P]

    # gather matched GT boxes / labels via one-hot over O (O is tiny)
    onehot_b = best_truth_idx[None, :] == gt_ids                                # [O,P]
    onehot = onehot_b.astype(jnp.float32)
    gx1 = jnp.sum(onehot * tx1, axis=0)                                         # [P]
    gy1 = jnp.sum(onehot * ty1, axis=0)
    gx2 = jnp.sum(onehot * tx2, axis=0)
    gy2 = jnp.sum(onehot * ty2, axis=0)

    conf_match = jnp.sum(jnp.where(onehot_b, lab + 1, 0), axis=0)               # [P] i32
    conf_t = jnp.where(best_truth_overlap < MATCHED_THRESHOLD, 0, conf_match)   # [P] i32
    pos = conf_t > 0
    npos = jnp.sum(pos.astype(jnp.float32))                                     # scalar

    # ---------------- confidence loss: CE + hard negative mining ----------------
    x = conf_ref[0]                                                             # [C,P]
    xmax = jnp.max(x, axis=0, keepdims=True)                                    # [1,P]
    lse = jnp.log(jnp.sum(jnp.exp(x - xmax), axis=0)) + xmax[0]                 # [P]
    cls_ids = lax.broadcasted_iota(jnp.int32, (C, P), 0)
    x_t = jnp.sum(jnp.where(cls_ids == conf_t[None, :], x, 0.0), axis=0)        # [P]
    ce = lse - x_t                                                              # [P]

    lmine = jnp.where(pos, 0.0, ce)                                             # [P]
    # rank[i] = #{ j : lmine[j] > lmine[i]  or (== and j < i) }
    # (stable descending-sort rank == torch's double argsort, up to tie order)
    lm_j = lmine[:, None]                                                       # [P,1]
    lm_i = lmine[None, :]                                                       # [1,P]
    jj = lax.broadcasted_iota(jnp.int32, (P, P), 0)
    ii = lax.broadcasted_iota(jnp.int32, (P, P), 1)
    before = (lm_j > lm_i) | ((lm_j == lm_i) & (jj < ii))                       # [P,P] bool
    # bf16 0/1 operands are exact; f32 MXU accumulation keeps the count exact.
    before_bf = before.astype(jnp.float32).astype(jnp.bfloat16)                 # [P,P] bf16
    ones_row = jnp.ones((8, P), jnp.bfloat16)
    rank = jnp.dot(ones_row, before_bf,
                   preferred_element_type=jnp.float32)[0]                       # [P]

    nneg = jnp.minimum(NEGPOS_RATIO * npos, float(P - 1))                       # scalar
    sel = pos | (rank < nneg)
    loss_c = jnp.sum(jnp.where(sel, ce, 0.0))

    # ---------------- localization loss: decode + GIoU over positives ----------------
    l = loc_ref[0]                                                              # [4,P]
    cx = pcx + l[0] * v0 * pw
    cy = pcy + l[1] * v0 * ph
    w = pw * jnp.exp(l[2] * v1)
    h = ph * jnp.exp(l[3] * v1)
    x1 = cx - 0.5 * w
    y1 = cy - 0.5 * h
    x2 = x1 + w
    y2 = y1 + h

    area_d = (x2 - x1) * (y2 - y1)
    area_g = (gx2 - gx1) * (gy2 - gy1)
    iw2 = jnp.maximum(jnp.minimum(x2, gx2) - jnp.maximum(x1, gx1), 0.0)
    ih2 = jnp.maximum(jnp.minimum(y2, gy2) - jnp.maximum(y1, gy1), 0.0)
    inter2 = iw2 * ih2
    ow = jnp.maximum(jnp.maximum(x2, gx2) - jnp.minimum(x1, gx1), 0.0)
    oh = jnp.maximum(jnp.maximum(y2, gy2) - jnp.minimum(y1, gy1), 0.0)
    outer = ow * oh
    union = area_d + area_g - inter2
    giou = jnp.clip(inter2 / union - (outer - union) / outer, -1.0, 1.0)
    loss_l = 5.0 * jnp.sum(jnp.where(pos, 1.0 - giou, 0.0))

    # lane-dense (8,128) output tile: lane 0 = loss_l, lane 1 = loss_c, lane 2 = npos
    lane = lax.broadcasted_iota(jnp.int32, (8, 128), 1)
    vals = jnp.where(lane == 0, loss_l,
                     jnp.where(lane == 1, loss_c,
                               jnp.where(lane == 2, npos, 0.0)))
    out_ref[0] = vals


# ---------------------------------------------------------------------------
# Wrapper
# ---------------------------------------------------------------------------
def prepare_priors(priors):
    """[P,4] center-form priors -> [8,P] stack of center + corner form.
    Priors are static: compute this ONCE outside the jitted loss."""
    cx, cy, w, h = priors[:, 0], priors[:, 1], priors[:, 2], priors[:, 3]
    return jnp.stack(
        [cx, cy, w, h, cx - 0.5 * w, cy - 0.5 * h, cx + 0.5 * w, cy + 0.5 * h],
        axis=0).astype(jnp.float32)


def multibox_loss(loc_data, conf_data, prior_stack, targets):
    """loc_data [B,4,P] / conf_data [B,C,P]: coordinate-/class-major straight from the
    detection head (no HBM transpose in front of the kernel). prior_stack [8,P] from
    prepare_priors. targets [B,O,5] = (x1,y1,x2,y2,label), label < 0 marks padding."""
    B, C, P = conf_data.shape
    O = targets.shape[1]
    out = pl.pallas_call(
        multibox_kernel,
        out_shape=jax.ShapeDtypeStruct((B, 8, 128), jnp.float32),
        grid=(B,),
        in_specs=[
            pl.BlockSpec((1, C, P), lambda b: (b, 0, 0)),
            pl.BlockSpec((1, 4, P), lambda b: (b, 0, 0)),
            pl.BlockSpec((8, P), lambda b: (0, 0)),      # resident across the grid
            pl.BlockSpec((1, O, 5), lambda b: (b, 0, 0)),
        ],
        out_specs=pl.BlockSpec((1, 8, 128), lambda b: (b, 0, 0)),
        compiler_params=pltpu.CompilerParams(
            dimension_semantics=("parallel",)),            # 2 TCs on v7x
    )(conf_data, loc_data, prior_stack, targets)
    # per-image partials -> global sums; division in f32 (no f64 on TPU).
    # Forced best-prior matches guarantee num_pos >= 1 when any valid GT exists.
    loss_l = jnp.sum(out[:, 0, 0])
    loss_c = jnp.sum(out[:, 0, 1])
    n = jnp.sum(out[:, 0, 2])
    return loss_l / n, loss_c / n


# ---------------------------------------------------------------------------
# Example run
# ---------------------------------------------------------------------------
if __name__ == "__main__":
    key = jax.random.PRNGKey(0)
    B, P, C, O = 2, 128, NUM_CLASSES, 3
    k1, k2, k3, k4, k5 = jax.random.split(key, 5)

    # priors: regular 8x16 grid of centers in (0,1), fixed 0.2x0.2 boxes (center form)
    gy, gx = jnp.meshgrid((jnp.arange(8, dtype=jnp.float32) + 0.5) / 8.0,
                          (jnp.arange(16, dtype=jnp.float32) + 0.5) / 16.0,
                          indexing="ij")
    priors = jnp.stack([gx.reshape(-1), gy.reshape(-1),
                        jnp.full((P,), 0.2, jnp.float32),
                        jnp.full((P,), 0.2, jnp.float32)], axis=1)    # [P,4]
    prior_stack = prepare_priors(priors)   # static: computed once, outside jit

    # detection head emits coordinate-/class-major layouts directly
    loc_data = 0.1 * jax.random.normal(k1, (B, 4, P), dtype=jnp.float32)
    conf_data = jax.random.normal(k2, (B, C, P), dtype=jnp.float32)

    # targets: [B, O, 5] = (x1,y1,x2,y2,label); label < 0 would mark a padded row
    ctr = 0.3 + 0.4 * jax.random.uniform(k3, (B, O, 2), dtype=jnp.float32)
    sz = 0.15 + 0.2 * jax.random.uniform(k4, (B, O, 2), dtype=jnp.float32)
    boxes = jnp.concatenate([ctr - sz / 2, ctr + sz / 2], axis=-1)
    labels = jax.random.randint(k5, (B, O, 1), 0, C - 1).astype(jnp.float32)
    targets = jnp.concatenate([boxes, labels], axis=-1).astype(jnp.float32)

    loss_l, loss_c = jax.jit(multibox_loss)(loc_data, conf_data, prior_stack, targets)
    jax.block_until_ready((loss_l, loss_c))
    assert jnp.isfinite(loss_l) and jnp.isfinite(loss_c)
    print("KERNEL_OK")
</pallas_src>

<mosaic_0001>
module attributes {stable_mosaic.version = 11 : i64} {
  func.func @multibox_kernel(%arg0: i32, %arg1: memref<1x8x128xf32, #tpu.memory_space<vmem>>, %arg2: memref<1x4x128xf32, #tpu.memory_space<vmem>>, %arg3: memref<8x128xf32, #tpu.memory_space<vmem>>, %arg4: memref<1x3x5xf32, #tpu.memory_space<vmem>>, %arg5: memref<1x8x128xf32, #tpu.memory_space<vmem>>) attributes {dimension_semantics = [#tpu.dimension_semantics<parallel>], iteration_bounds = array<i64: 2>, scalar_prefetch = 0 : i64, scratch_operands = 0 : i64, tpu.core_type = #tpu.core_type<tc>, window_params = [{transform_indices = @transform_0, window_bounds = array<i64: 1, 8, 128>}, {transform_indices = @transform_1, window_bounds = array<i64: 1, 4, 128>}, {pipeline_mode = #tpu.pipeline_mode<synchronous>, transform_indices = @transform_2, window_bounds = array<i64: 8, 128>}, {transform_indices = @transform_3, window_bounds = array<i64: 1, 3, 5>}, {transform_indices = @transform_4, window_bounds = array<i64: 1, 8, 128>}]} {
    %c0 = arith.constant 0 : index
    %c0_0 = arith.constant 0 : index
    %0 = vector.load %arg3[%c0, %c0_0] : memref<8x128xf32, #tpu.memory_space<vmem>>, vector<8x128xf32>
    %1 = vector.extract_strided_slice %0 {offsets = [0, 0], sizes = [1, 128], strides = [1, 1]} : vector<8x128xf32> to vector<1x128xf32>
    %2 = vector.shape_cast %1 : vector<1x128xf32> to vector<128xf32>
    %3 = vector.extract_strided_slice %0 {offsets = [1, 0], sizes = [1, 128], strides = [1, 1]} : vector<8x128xf32> to vector<1x128xf32>
    %4 = vector.shape_cast %3 : vector<1x128xf32> to vector<128xf32>
    %5 = vector.extract_strided_slice %0 {offsets = [2, 0], sizes = [1, 128], strides = [1, 1]} : vector<8x128xf32> to vector<1x128xf32>
    %6 = vector.shape_cast %5 : vector<1x128xf32> to vector<128xf32>
    %7 = vector.extract_strided_slice %0 {offsets = [3, 0], sizes = [1, 128], strides = [1, 1]} : vector<8x128xf32> to vector<1x128xf32>
    %8 = vector.shape_cast %7 : vector<1x128xf32> to vector<128xf32>
    %9 = vector.extract_strided_slice %0 {offsets = [4, 0], sizes = [1, 128], strides = [1, 1]} : vector<8x128xf32> to vector<1x128xf32>
    %10 = vector.shape_cast %9 : vector<1x128xf32> to vector<128xf32>
    %11 = vector.extract_strided_slice %0 {offsets = [5, 0], sizes = [1, 128], strides = [1, 1]} : vector<8x128xf32> to vector<1x128xf32>
    %12 = vector.shape_cast %11 : vector<1x128xf32> to vector<128xf32>
    %13 = vector.extract_strided_slice %0 {offsets = [6, 0], sizes = [1, 128], strides = [1, 1]} : vector<8x128xf32> to vector<1x128xf32>
    %14 = vector.shape_cast %13 : vector<1x128xf32> to vector<128xf32>
    %15 = vector.extract_strided_slice %0 {offsets = [7, 0], sizes = [1, 128], strides = [1, 1]} : vector<8x128xf32> to vector<1x128xf32>
    %16 = vector.shape_cast %15 : vector<1x128xf32> to vector<128xf32>
    %c0_1 = arith.constant 0 : index
    %c0_2 = arith.constant 0 : index
    %c0_3 = arith.constant 0 : index
    %17 = vector.load %arg4[%c0_1, %c0_2, %c0_3] : memref<1x3x5xf32, #tpu.memory_space<vmem>>, vector<1x3x5xf32>
    %18 = vector.shape_cast %17 : vector<1x3x5xf32> to vector<3x5xf32>
    %19 = vector.extract_strided_slice %18 {offsets = [0, 0], sizes = [3, 1], strides = [1, 1]} : vector<3x5xf32> to vector<3x1xf32>
    %20 = vector.extract_strided_slice %18 {offsets = [0, 1], sizes = [3, 1], strides = [1, 1]} : vector<3x5xf32> to vector<3x1xf32>
    %21 = vector.extract_strided_slice %18 {offsets = [0, 2], sizes = [3, 1], strides = [1, 1]} : vector<3x5xf32> to vector<3x1xf32>
    %22 = vector.extract_strided_slice %18 {offsets = [0, 3], sizes = [3, 1], strides = [1, 1]} : vector<3x5xf32> to vector<3x1xf32>
    %23 = vector.extract_strided_slice %18 {offsets = [0, 4], sizes = [3, 1], strides = [1, 1]} : vector<3x5xf32> to vector<3x1xf32>
    %24 = arith.fptosi %23 : vector<3x1xf32> to vector<3x1xi32>
    %c0_i32 = arith.constant 0 : i32
    %25 = vector.broadcast %c0_i32 : i32 to vector<3x1xi32>
    %26 = arith.cmpi sge, %24, %25 : vector<3x1xi32>
    %27 = vector.shape_cast %14 : vector<128xf32> to vector<1x128xf32>
    %28 = vector.broadcast %21 : vector<3x1xf32> to vector<3x128xf32>
    %29 = vector.broadcast %27 : vector<1x128xf32> to vector<3x128xf32>
    %30 = arith.minimumf %28, %29 : vector<3x128xf32>
    %31 = vector.shape_cast %10 : vector<128xf32> to vector<1x128xf32>
    %32 = vector.broadcast %19 : vector<3x1xf32> to vector<3x128xf32>
    %33 = vector.broadcast %31 : vector<1x128xf32> to vector<3x128xf32>
    %34 = arith.maximumf %32, %33 : vector<3x128xf32>
    %35 = arith.subf %30, %34 : vector<3x128xf32>
    %cst = arith.constant 0.000000e+00 : f32
    %36 = vector.broadcast %cst : f32 to vector<3x128xf32>
    %37 = arith.maximumf %35, %36 : vector<3x128xf32>
    %38 = vector.shape_cast %16 : vector<128xf32> to vector<1x128xf32>
    %39 = vector.broadcast %22 : vector<3x1xf32> to vector<3x128xf32>
    %40 = vector.broadcast %38 : vector<1x128xf32> to vector<3x128xf32>
    %41 = arith.minimumf %39, %40 : vector<3x128xf32>
    %42 = vector.shape_cast %12 : vector<128xf32> to vector<1x128xf32>
    %43 = vector.broadcast %20 : vector<3x1xf32> to vector<3x128xf32>
    %44 = vector.broadcast %42 : vector<1x128xf32> to vector<3x128xf32>
    %45 = arith.maximumf %43, %44 : vector<3x128xf32>
    %46 = arith.subf %41, %45 : vector<3x128xf32>
    %cst_4 = arith.constant 0.000000e+00 : f32
    %47 = vector.broadcast %cst_4 : f32 to vector<3x128xf32>
    %48 = arith.maximumf %46, %47 : vector<3x128xf32>
    %49 = arith.mulf %37, %48 : vector<3x128xf32>
    %50 = arith.subf %21, %19 : vector<3x1xf32>
    %51 = arith.subf %22, %20 : vector<3x1xf32>
    %52 = arith.mulf %50, %51 : vector<3x1xf32>
    %53 = arith.subf %14, %10 : vector<128xf32>
    %54 = arith.subf %16, %12 : vector<128xf32>
    %55 = arith.mulf %53, %54 : vector<128xf32>
    %56 = vector.shape_cast %55 : vector<128xf32> to vector<1x128xf32>
    %57 = vector.broadcast %52 : vector<3x1xf32> to vector<3x128xf32>
    %58 = vector.broadcast %56 : vector<1x128xf32> to vector<3x128xf32>
    %59 = arith.addf %57, %58 : vector<3x128xf32>
    %60 = arith.subf %59, %49 : vector<3x128xf32>
    %61 = arith.divf %49, %60 : vector<3x128xf32>
    %cst_5 = arith.constant -1.000000e+00 : f32
    %62 = vector.shape_cast %26 : vector<3x1xi1> to vector<3x1xi1>
    %63 = vector.broadcast %62 : vector<3x1xi1> to vector<3x128xi1>
    %64 = vector.broadcast %cst_5 : f32 to vector<3x128xf32>
    %65 = arith.select %63, %61, %64 : vector<3x128xi1>, vector<3x128xf32>
    %66 = tpu.iota {dimensions = array<i32: 1>} : vector<3x128xi32>
    %67 = tpu.iota {dimensions = array<i32: 0>} : vector<3x128xi32>
    %cst_6 = arith.constant dense<0xFF800000> : vector<3xf32>
    %68 = vector.multi_reduction <maximumf>, %65, %cst_6 [1] : vector<3x128xf32> to vector<3xf32>
    %69 = vector.shape_cast %68 : vector<3xf32> to vector<3x1xf32>
    %70 = vector.broadcast %69 : vector<3x1xf32> to vector<3x128xf32>
    %71 = arith.cmpf oeq, %65, %70 : vector<3x128xf32>
    %c128_i32 = arith.constant 128 : i32
    %72 = vector.broadcast %c128_i32 : i32 to vector<3x128xi32>
    %73 = arith.select %71, %66, %72 : vector<3x128xi1>, vector<3x128xi32>
    %cst_7 = arith.constant dense<2147483647> : vector<3xi32>
    %74 = vector.multi_reduction <minsi>, %73, %cst_7 [1] : vector<3x128xi32> to vector<3xi32>
    %75 = vector.shape_cast %74 : vector<3xi32> to vector<3x1xi32>
    %cst_8 = arith.constant dense<0xFF800000> : vector<128xf32>
    %76 = vector.multi_reduction <maximumf>, %65, %cst_8 [0] : vector<3x128xf32> to vector<128xf32>
    %77 = vector.shape_cast %76 : vector<128xf32> to vector<1x128xf32>
    %78 = vector.broadcast %77 : vector<1x128xf32> to vector<3x128xf32>
    %79 = arith.cmpf oeq, %65, %78 : vector<3x128xf32>
    %c3_i32 = arith.constant 3 : i32
    %80 = vector.broadcast %c3_i32 : i32 to vector<3x128xi32>
    %81 = arith.select %79, %67, %80 : vector<3x128xi1>, vector<3x128xi32>
    %cst_9 = arith.constant dense<2147483647> : vector<128xi32>
    %82 = vector.multi_reduction <minsi>, %81, %cst_9 [0] : vector<3x128xi32> to vector<128xi32>
    %83 = vector.broadcast %75 : vector<3x1xi32> to vector<3x128xi32>
    %84 = arith.cmpi eq, %83, %66 : vector<3x128xi32>
    %85 = vector.broadcast %26 : vector<3x1xi1> to vector<3x128xi1>
    %86 = arith.andi %84, %85 : vector<3x128xi1>
    %c-1_i32 = arith.constant -1 : i32
    %87 = vector.broadcast %c-1_i32 : i32 to vector<3x128xi32>
    %88 = arith.select %86, %67, %87 : vector<3x128xi1>, vector<3x128xi32>
    %cst_10 = arith.constant dense<-2147483648> : vector<128xi32>
    %89 = vector.multi_reduction <maxsi>, %88, %cst_10 [0] : vector<3x128xi32> to vector<128xi32>
    %c0_i32_11 = arith.constant 0 : i32
    %90 = vector.broadcast %c0_i32_11 : i32 to vector<128xi32>
    %91 = arith.cmpi sge, %89, %90 : vector<128xi32>
    %92 = arith.select %91, %89, %82 : vector<128xi1>, vector<128xi32>
    %cst_12 = arith.constant 2.000000e+00 : f32
    %93 = vector.broadcast %cst_12 : f32 to vector<128xf32>
    %94 = arith.select %91, %93, %76 : vector<128xi1>, vector<128xf32>
    %95 = vector.shape_cast %92 : vector<128xi32> to vector<1x128xi32>
    %96 = vector.broadcast %95 : vector<1x128xi32> to vector<3x128xi32>
    %97 = arith.cmpi eq, %96, %67 : vector<3x128xi32>
    %98 = arith.extui %97 : vector<3x128xi1> to vector<3x128xi32>
    %99 = arith.sitofp %98 : vector<3x128xi32> to vector<3x128xf32>
    %100 = vector.broadcast %19 : vector<3x1xf32> to vector<3x128xf32>
    %101 = arith.mulf %99, %100 : vector<3x128xf32>
    %cst_13 = arith.constant dense<0.000000e+00> : vector<128xf32>
    %102 = vector.multi_reduction <add>, %101, %cst_13 [0] : vector<3x128xf32> to vector<128xf32>
    %103 = vector.broadcast %20 : vector<3x1xf32> to vector<3x128xf32>
    %104 = arith.mulf %99, %103 : vector<3x128xf32>
    %cst_14 = arith.constant dense<0.000000e+00> : vector<128xf32>
    %105 = vector.multi_reduction <add>, %104, %cst_14 [0] : vector<3x128xf32> to vector<128xf32>
    %106 = vector.broadcast %21 : vector<3x1xf32> to vector<3x128xf32>
    %107 = arith.mulf %99, %106 : vector<3x128xf32>
    %cst_15 = arith.constant dense<0.000000e+00> : vector<128xf32>
    %108 = vector.multi_reduction <add>, %107, %cst_15 [0] : vector<3x128xf32> to vector<128xf32>
    %109 = vector.broadcast %22 : vector<3x1xf32> to vector<3x128xf32>
    %110 = arith.mulf %99, %109 : vector<3x128xf32>
    %cst_16 = arith.constant dense<0.000000e+00> : vector<128xf32>
    %111 = vector.multi_reduction <add>, %110, %cst_16 [0] : vector<3x128xf32> to vector<128xf32>
    %c1_i32 = arith.constant 1 : i32
    %112 = vector.broadcast %c1_i32 : i32 to vector<3x1xi32>
    %113 = arith.addi %24, %112 : vector<3x1xi32>
    %c0_i32_17 = arith.constant 0 : i32
    %114 = vector.shape_cast %113 : vector<3x1xi32> to vector<3x1xi32>
    %115 = vector.broadcast %114 : vector<3x1xi32> to vector<3x128xi32>
    %116 = vector.broadcast %c0_i32_17 : i32 to vector<3x128xi32>
    %117 = arith.select %97, %115, %116 : vector<3x128xi1>, vector<3x128xi32>
    %cst_18 = arith.constant dense<0> : vector<128xi32>
    %118 = vector.multi_reduction <add>, %117, %cst_18 [0] : vector<3x128xi32> to vector<128xi32>
    %cst_19 = arith.constant 5.000000e-01 : f32
    %119 = vector.broadcast %cst_19 : f32 to vector<128xf32>
    %120 = arith.cmpf olt, %94, %119 : vector<128xf32>
    %c0_i32_20 = arith.constant 0 : i32
    %121 = vector.broadcast %c0_i32_20 : i32 to vector<128xi32>
    %122 = arith.select %120, %121, %118 : vector<128xi1>, vector<128xi32>
    %c0_i32_21 = arith.constant 0 : i32
    %123 = vector.broadcast %c0_i32_21 : i32 to vector<128xi32>
    %124 = arith.cmpi sgt, %122, %123 : vector<128xi32>
    %125 = arith.extui %124 : vector<128xi1> to vector<128xi32>
    %126 = arith.sitofp %125 : vector<128xi32> to vector<128xf32>
    %127 = vector.shape_cast %126 : vector<128xf32> to vector<1x128xf32>
    %cst_22 = arith.constant dense<0.000000e+00> : vector<1xf32>
    %128 = vector.multi_reduction <add>, %127, %cst_22 [1] : vector<1x128xf32> to vector<1xf32>
    %129 = vector.shape_cast %128 : vector<1xf32> to vector<1x1xf32>
    %130 = vector.extract %129[0, 0] : f32 from vector<1x1xf32>
    %c0_23 = arith.constant 0 : index
    %c0_24 = arith.constant 0 : index
    %c0_25 = arith.constant 0 : index
    %131 = vector.load %arg1[%c0_23, %c0_24, %c0_25] : memref<1x8x128xf32, #tpu.memory_space<vmem>>, vector<1x8x128xf32>
    %132 = vector.shape_cast %131 : vector<1x8x128xf32> to vector<8x128xf32>
    %cst_26 = arith.constant dense<0xFF800000> : vector<128xf32>
    %133 = vector.multi_reduction <maximumf>, %132, %cst_26 [0] : vector<8x128xf32> to vector<128xf32>
    %134 = vector.shape_cast %133 : vector<128xf32> to vector<1x128xf32>
    %135 = vector.broadcast %134 : vector<1x128xf32> to vector<8x128xf32>
    %136 = arith.subf %132, %135 : vector<8x128xf32>
    %137 = math.exp %136 : vector<8x128xf32>
    %cst_27 = arith.constant dense<0.000000e+00> : vector<128xf32>
    %138 = vector.multi_reduction <add>, %137, %cst_27 [0] : vector<8x128xf32> to vector<128xf32>
    %139 = math.log %138 : vector<128xf32>
    %140 = vector.shape_cast %134 : vector<1x128xf32> to vector<128xf32>
    %141 = arith.addf %139, %140 : vector<128xf32>
    %142 = tpu.iota {dimensions = array<i32: 0>} : vector<8x128xi32>
    %143 = vector.shape_cast %122 : vector<128xi32> to vector<1x128xi32>
    %144 = vector.broadcast %143 : vector<1x128xi32> to vector<8x128xi32>
    %145 = arith.cmpi eq, %142, %144 : vector<8x128xi32>
    %cst_28 = arith.constant 0.000000e+00 : f32
    %146 = vector.broadcast %cst_28 : f32 to vector<8x128xf32>
    %147 = arith.select %145, %132, %146 : vector<8x128xi1>, vector<8x128xf32>
    %cst_29 = arith.constant dense<0.000000e+00> : vector<128xf32>
    %148 = vector.multi_reduction <add>, %147, %cst_29 [0] : vector<8x128xf32> to vector<128xf32>
    %149 = arith.subf %141, %148 : vector<128xf32>
    %cst_30 = arith.constant 0.000000e+00 : f32
    %150 = vector.broadcast %cst_30 : f32 to vector<128xf32>
    %151 = arith.select %124, %150, %149 : vector<128xi1>, vector<128xf32>
    %152 = vector.shape_cast %151 : vector<128xf32> to vector<128x1xf32>
    %153 = vector.shape_cast %151 : vector<128xf32> to vector<1x128xf32>
    %154 = tpu.iota {dimensions = array<i32: 0>} : vector<128x128xi32>
    %155 = tpu.iota {dimensions = array<i32: 1>} : vector<128x128xi32>
    %156 = vector.broadcast %152 : vector<128x1xf32> to vector<128x128xf32>
    %157 = vector.broadcast %153 : vector<1x128xf32> to vector<128x128xf32>
    %158 = arith.cmpf ogt, %156, %157 : vector<128x128xf32>
    %159 = vector.broadcast %152 : vector<128x1xf32> to vector<128x128xf32>
    %160 = vector.broadcast %153 : vector<1x128xf32> to vector<128x128xf32>
    %161 = arith.cmpf oeq, %159, %160 : vector<128x128xf32>
    %162 = arith.cmpi slt, %154, %155 : vector<128x128xi32>
    %163 = arith.andi %161, %162 : vector<128x128xi1>
    %164 = arith.ori %158, %163 : vector<128x128xi1>
    %165 = arith.extui %164 : vector<128x128xi1> to vector<128x128xi32>
    %166 = arith.sitofp %165 : vector<128x128xi32> to vector<128x128xf32>
    %167 = arith.truncf %166 : vector<128x128xf32> to vector<128x128xbf16>
    %cst_31 = arith.constant 1.000000e+00 : bf16
    %168 = vector.broadcast %cst_31 : bf16 to vector<8x128xbf16>
    %cst_32 = arith.constant dense<0.000000e+00> : vector<8x128xf32>
    %169 = tpu.matmul %168, %167, %cst_32 {dimension_numbers = #tpu.dot_dimension_numbers<[1], [0], [0], [1], [0, 0, 1, 1], [], []>} : vector<8x128xbf16>, vector<128x128xbf16>, vector<8x128xf32> -> vector<8x128xf32>
    %170 = vector.extract_strided_slice %169 {offsets = [0, 0], sizes = [1, 128], strides = [1, 1]} : vector<8x128xf32> to vector<1x128xf32>
    %171 = vector.shape_cast %170 : vector<1x128xf32> to vector<128xf32>
    %cst_33 = arith.constant 3.000000e+00 : f32
    %172 = arith.mulf %cst_33, %130 : f32
    %cst_34 = arith.constant 1.270000e+02 : f32
    %173 = arith.minimumf %172, %cst_34 : f32
    %174 = vector.broadcast %173 : f32 to vector<128xf32>
    %175 = arith.cmpf olt, %171, %174 : vector<128xf32>
    %176 = arith.ori %124, %175 : vector<128xi1>
    %cst_35 = arith.constant 0.000000e+00 : f32
    %177 = vector.broadcast %cst_35 : f32 to vector<128xf32>
    %178 = arith.select %176, %149, %177 : vector<128xi1>, vector<128xf32>
    %179 = vector.shape_cast %178 : vector<128xf32> to vector<1x128xf32>
    %cst_36 = arith.constant dense<0.000000e+00> : vector<1xf32>
    %180 = vector.multi_reduction <add>, %179, %cst_36 [1] : vector<1x128xf32> to vector<1xf32>
    %181 = vector.shape_cast %180 : vector<1xf32> to vector<1x1xf32>
    %182 = vector.extract %181[0, 0] : f32 from vector<1x1xf32>
    %c0_37 = arith.constant 0 : index
    %c0_38 = arith.constant 0 : index
    %c0_39 = arith.constant 0 : index
    %183 = vector.load %arg2[%c0_37, %c0_38, %c0_39] : memref<1x4x128xf32, #tpu.memory_space<vmem>>, vector<1x4x128xf32>
    %184 = vector.shape_cast %183 : vector<1x4x128xf32> to vector<4x128xf32>
    %185 = vector.extract_strided_slice %184 {offsets = [0, 0], sizes = [1, 128], strides = [1, 1]} : vector<4x128xf32> to vector<1x128xf32>
    %186 = vector.shape_cast %185 : vector<1x128xf32> to vector<128xf32>
    %cst_40 = arith.constant 1.000000e-01 : f32
    %187 = vector.broadcast %cst_40 : f32 to vector<128xf32>
    %188 = arith.mulf %186, %187 : vector<128xf32>
    %189 = arith.mulf %188, %6 : vector<128xf32>
    %190 = arith.addf %2, %189 : vector<128xf32>
    %191 = vector.extract_strided_slice %184 {offsets = [1, 0], sizes = [1, 128], strides = [1, 1]} : vector<4x128xf32> to vector<1x128xf32>
    %192 = vector.shape_cast %191 : vector<1x128xf32> to vector<128xf32>
    %cst_41 = arith.constant 1.000000e-01 : f32
    %193 = vector.broadcast %cst_41 : f32 to vector<128xf32>
    %194 = arith.mulf %192, %193 : vector<128xf32>
    %195 = arith.mulf %194, %8 : vector<128xf32>
    %196 = arith.addf %4, %195 : vector<128xf32>
    %197 = vector.extract_strided_slice %184 {offsets = [2, 0], sizes = [1, 128], strides = [1, 1]} : vector<4x128xf32> to vector<1x128xf32>
    %198 = vector.shape_cast %197 : vector<1x128xf32> to vector<128xf32>
    %cst_42 = arith.constant 2.000000e-01 : f32
    %199 = vector.broadcast %cst_42 : f32 to vector<128xf32>
    %200 = arith.mulf %198, %199 : vector<128xf32>
    %201 = math.exp %200 : vector<128xf32>
    %202 = arith.mulf %6, %201 : vector<128xf32>
    %203 = vector.extract_strided_slice %184 {offsets = [3, 0], sizes = [1, 128], strides = [1, 1]} : vector<4x128xf32> to vector<1x128xf32>
    %204 = vector.shape_cast %203 : vector<1x128xf32> to vector<128xf32>
    %cst_43 = arith.constant 2.000000e-01 : f32
    %205 = vector.broadcast %cst_43 : f32 to vector<128xf32>
    %206 = arith.mulf %204, %205 : vector<128xf32>
    %207 = math.exp %206 : vector<128xf32>
    %208 = arith.mulf %8, %207 : vector<128xf32>
    %cst_44 = arith.constant 5.000000e-01 : f32
    %209 = vector.broadcast %cst_44 : f32 to vector<128xf32>
    %210 = arith.mulf %209, %202 : vector<128xf32>
    %211 = arith.subf %190, %210 : vector<128xf32>
    %cst_45 = arith.constant 5.000000e-01 : f32
    %212 = vector.broadcast %cst_45 : f32 to vector<128xf32>
    %213 = arith.mulf %212, %208 : vector<128xf32>
    %214 = arith.subf %196, %213 : vector<128xf32>
    %215 = arith.addf %211, %202 : vector<128xf32>
    %216 = arith.addf %214, %208 : vector<128xf32>
    %217 = arith.subf %215, %211 : vector<128xf32>
    %218 = arith.subf %216, %214 : vector<128xf32>
    %219 = arith.mulf %217, %218 : vector<128xf32>
    %220 = arith.subf %108, %102 : vector<128xf32>
    %221 = arith.subf %111, %105 : vector<128xf32>
    %222 = arith.mulf %220, %221 : vector<128xf32>
    %223 = arith.minimumf %215, %108 : vector<128xf32>
    %224 = arith.maximumf %211, %102 : vector<128xf32>
    %225 = arith.subf %223, %224 : vector<128xf32>
    %cst_46 = arith.constant 0.000000e+00 : f32
    %226 = vector.broadcast %cst_46 : f32 to vector<128xf32>
    %227 = arith.maximumf %225, %226 : vector<128xf32>
    %228 = arith.minimumf %216, %111 : vector<128xf32>
    %229 = arith.maximumf %214, %105 : vector<128xf32>
    %230 = arith.subf %228, %229 : vector<128xf32>
    %cst_47 = arith.constant 0.000000e+00 : f32
    %231 = vector.broadcast %cst_47 : f32 to vector<128xf32>
    %232 = arith.maximumf %230, %231 : vector<128xf32>
    %233 = arith.mulf %227, %232 : vector<128xf32>
    %234 = arith.maximumf %215, %108 : vector<128xf32>
    %235 = arith.minimumf %211, %102 : vector<128xf32>
    %236 = arith.subf %234, %235 : vector<128xf32>
    %cst_48 = arith.constant 0.000000e+00 : f32
    %237 = vector.broadcast %cst_48 : f32 to vector<128xf32>
    %238 = arith.maximumf %236, %237 : vector<128xf32>
    %239 = arith.maximumf %216, %111 : vector<128xf32>
    %240 = arith.minimumf %214, %105 : vector<128xf32>
    %241 = arith.subf %239, %240 : vector<128xf32>
    %cst_49 = arith.constant 0.000000e+00 : f32
    %242 = vector.broadcast %cst_49 : f32 to vector<128xf32>
    %243 = arith.maximumf %241, %242 : vector<128xf32>
    %244 = arith.mulf %238, %243 : vector<128xf32>
    %245 = arith.addf %219, %222 : vector<128xf32>
    %246 = arith.subf %245, %233 : vector<128xf32>
    %247 = arith.divf %233, %246 : vector<128xf32>
    %248 = arith.subf %244, %246 : vector<128xf32>
    %249 = arith.divf %248, %244 : vector<128xf32>
    %250 = arith.subf %247, %249 : vector<128xf32>
    %cst_50 = arith.constant -1.000000e+00 : f32
    %cst_51 = arith.constant 1.000000e+00 : f32
    %251 = vector.broadcast %cst_50 : f32 to vector<128xf32>
    %252 = arith.maximumf %251, %250 : vector<128xf32>
    %253 = vector.broadcast %cst_51 : f32 to vector<128xf32>
    %254 = arith.minimumf %253, %252 : vector<128xf32>
    %cst_52 = arith.constant 1.000000e+00 : f32
    %255 = vector.broadcast %cst_52 : f32 to vector<128xf32>
    %256 = arith.subf %255, %254 : vector<128xf32>
    %cst_53 = arith.constant 0.000000e+00 : f32
    %257 = vector.broadcast %cst_53 : f32 to vector<128xf32>
    %258 = arith.select %124, %256, %257 : vector<128xi1>, vector<128xf32>
    %259 = vector.shape_cast %258 : vector<128xf32> to vector<1x128xf32>
    %cst_54 = arith.constant dense<0.000000e+00> : vector<1xf32>
    %260 = vector.multi_reduction <add>, %259, %cst_54 [1] : vector<1x128xf32> to vector<1xf32>
    %261 = vector.shape_cast %260 : vector<1xf32> to vector<1x1xf32>
    %262 = vector.extract %261[0, 0] : f32 from vector<1x1xf32>
    %cst_55 = arith.constant 5.000000e+00 : f32
    %263 = arith.mulf %cst_55, %262 : f32
    %264 = tpu.iota {dimensions = array<i32: 1>} : vector<8x128xi32>
    %c0_i32_56 = arith.constant 0 : i32
    %265 = vector.broadcast %c0_i32_56 : i32 to vector<8x128xi32>
    %266 = arith.cmpi eq, %264, %265 : vector<8x128xi32>
    %c1_i32_57 = arith.constant 1 : i32
    %267 = vector.broadcast %c1_i32_57 : i32 to vector<8x128xi32>
    %268 = arith.cmpi eq, %264, %267 : vector<8x128xi32>
    %c2_i32 = arith.constant 2 : i32
    %269 = vector.broadcast %c2_i32 : i32 to vector<8x128xi32>
    %270 = arith.cmpi eq, %264, %269 : vector<8x128xi32>
    %cst_58 = arith.constant 0.000000e+00 : f32
    %271 = vector.broadcast %130 : f32 to vector<8x128xf32>
    %272 = vector.broadcast %cst_58 : f32 to vector<8x128xf32>
    %273 = arith.select %270, %271, %272 : vector<8x128xi1>, vector<8x128xf32>
    %274 = vector.broadcast %182 : f32 to vector<8x128xf32>
    %275 = arith.select %268, %274, %273 : vector<8x128xi1>, vector<8x128xf32>
    %276 = vector.broadcast %263 : f32 to vector<8x128xf32>
    %277 = arith.select %266, %276, %275 : vector<8x128xi1>, vector<8x128xf32>
    %c0_59 = arith.constant 0 : index
    %c0_60 = arith.constant 0 : index
    %c0_61 = arith.constant 0 : index
    %278 = vector.load %arg5[%c0_59, %c0_60, %c0_61] : memref<1x8x128xf32, #tpu.memory_space<vmem>>, vector<1x8x128xf32>
    %279 = vector.shape_cast %278 : vector<1x8x128xf32> to vector<8x128xf32>
    %280 = vector.shape_cast %277 : vector<8x128xf32> to vector<1x8x128xf32>
    tpu.vector_store %arg5[%c0_59, %c0_60, %c0_61], %280 {strides = array<i32>} : memref<1x8x128xf32, #tpu.memory_space<vmem>>, vector<1x8x128xf32>,
    return
  }
  func.func @transform_0(%arg0: i32) -> (i32, i32, i32) {
    %c0_i32 = arith.constant 0 : i32
    %c0_i32_0 = arith.constant 0 : i32
    %c0_i32_1 = arith.constant 0 : i32
    return %arg0, %c0_i32, %c0_i32_0 : i32, i32, i32
  }
  func.func @transform_1(%arg0: i32) -> (i32, i32, i32) {
    %c0_i32 = arith.constant 0 : i32
    %c0_i32_0 = arith.constant 0 : i32
    %c0_i32_1 = arith.constant 0 : i32
    return %arg0, %c0_i32, %c0_i32_0 : i32, i32, i32
  }
  func.func @transform_2(%arg0: i32) -> (i32, i32) {
    %c0_i32 = arith.constant 0 : i32
    %c0_i32_0 = arith.constant 0 : i32
    %c0_i32_1 = arith.constant 0 : i32
    return %c0_i32, %c0_i32_0 : i32, i32
  }
  func.func @transform_3(%arg0: i32) -> (i32, i32, i32) {
    %c0_i32 = arith.constant 0 : i32
    %c0_i32_0 = arith.constant 0 : i32
    %c0_i32_1 = arith.constant 0 : i32
    return %arg0, %c0_i32, %c0_i32_0 : i32, i32, i32
  }
  func.func @transform_4(%arg0: i32) -> (i32, i32, i32) {
    %c0_i32 = arith.constant 0 : i32
    %c0_i32_0 = arith.constant 0 : i32
    %c0_i32_1 = arith.constant 0 : i32
    return %arg0, %c0_i32, %c0_i32_0 : i32, i32, i32
  }
}

</mosaic_0001>

<llo_original>
// kernel: multibox_loss.1
$region0: #{multibox_loss.1}
  #allocation0 [shape = 'u32[]', space=smem, size = 0x4, offset = 0x4, fixed_abs, tag = 'smem constant byte address 0x4 - core index']
  #allocation1 [shape = 'u32[72,128]{1,0:T(1,128)}', space=vmem, size = 0x9000, scoped, tag = 'internal scratch']
  %s0 = inlined_call_operand.hbm [shape: f32[2,8,128], index: 0, kind: input, shape index: {}]
  %s1 = inlined_call_operand.vmem [shape: f32[2,4,128], index: 1, kind: input, shape index: {}]
  %s2 = inlined_call_operand.hbm [shape: f32[8,128], index: 2, kind: input, shape index: {}]
  %s3 = inlined_call_operand.vmem [shape: f32[2,3,5], index: 3, kind: input, shape index: {}]
  %s4 = inlined_call_operand.vmem [shape: f32[2,8,128], index: 4, kind: output, shape index: {}]
  %s5 = sld [smem:[#allocation0]]
  $region57: #{multibox_loss.1} parent=0
    _
  %s7 = ssub.s32 1, %s5
  %s8 = scalar_select 0, %s7, %s5
  $region1: #{multibox_loss.1} parent=0
    #allocation2 [shape = 'u8[8192]{0}', space=vmem, size = 0x2000, scoped, tag = 'input window, operand 0']
    #allocation3 [shape = 's32[2]{0}', space=sflag, size = 0x8, scoped, tag = 'scoped memory for multibox_loss.1']
    #allocation4 [shape = 'u8[4096]{0}', space=vmem, size = 0x1000, scoped, tag = 'input window, operand 2, single buffered']
    #allocation5 [shape = 's32[1]{0}', space=sflag, size = 0x4, scoped, tag = 'scoped memory for multibox_loss.1']
    %9 = vsyncpa [#allocation3], 0
    %s10 = scalar_lea.sflag [#allocation3], 1
    %11 = vsyncpa %s10, 0
    %12 = vsyncpa [#allocation5], 0
    loop: start=0, step=1, limit=4
    $region2: #{multibox_loss.1} parent=1 // loop_pre_header
      _
    $region3: #{multibox_loss.1} parent=1 // loop_header
      %s14 = sphi 0, %s18
      %p15 = scmp.ge.s32.totalorder %s14, 4
      %s24 = sphi 0, %s26
      %s27 = sphi 0, %s24
      %s28 = sphi 0, %s27
      %s44 = sphi 0, %s28
      %s50 = sphi 0, %s52
      %s53 = sphi 0, %s50
      %s54 = sphi 0, %s53
      %s70 = sphi 0, %s54
      %s74 = sphi 0, %s74
      %s76 = sphi 0, %s74
      %s77 = sphi 0, %s76
      %s91 = sphi 0, %s77
      %s97 = sphi 0, %s99
      %s100 = sphi 0, %s97
      %s101 = sphi 0, %s100
      %s117 = sphi 0, %s101
      %s123 = sphi 0, %s125
      %s126 = sphi 0, %s123
      %s127 = sphi 0, %s126
      %s143 = sphi 0, %s127
    $region4: #{multibox_loss.1} parent=1 // loop_header_branch
      %17 = sbr.rel (%p15) target = $region8
    $region5: #{multibox_loss.1} parent=1 // loop_body
      %s19 = ssub.s32 %s14, 1
      %s20 = ssub.s32 %s14, 2
      %s21 = sadd.s32 %s14, 1
      %s22 = ssub.s32 %s14, %s21
      %p23 = scmp.eq.s32.totalorder %s22, 0
      %s25 = sadd.s32 %s24, 1
      %s26 = scalar_select %p23, %s24, %s25
      %p29 = pneg %p23
      %p30 = scmp.eq.s32.totalorder %s14, 1
      %p31 = por %p29, %p30
      %p32 = scmp.ne.s32.totalorder %s24, %s27
      %p33 = scmp.eq.s32.totalorder %s14, 0
      %p34 = por %p32, %p33
      %p35 = scmp.ne.s32.totalorder %s24, %s27
      %p36 = scmp.eq.s32.totalorder %s19, 1
      %p37 = por %p35, %p36
      %p38 = scmp.ne.s32.totalorder %s27, %s28
      %p39 = scmp.eq.s32.totalorder %s19, 0
      %p40 = por %p38, %p39
      %p41 = scmp.ne.s32.totalorder %s27, %s28
      %p42 = scmp.eq.s32.totalorder %s20, 1
      %p43 = por %p41, %p42
      %p45 = scmp.ne.s32.totalorder %s28, %s44
      %p46 = scmp.eq.s32.totalorder %s20, 0
      %p47 = por %p45, %p46
      %s48 = ssub.s32 %s14, %s21
      %p49 = scmp.eq.s32.totalorder %s48, 0
      %s51 = sadd.s32 %s50, 1
      %s52 = scalar_select %p49, %s50, %s51
      %p55 = pneg %p49
      %p56 = scmp.eq.s32.totalorder %s14, 1
      %p57 = por %p55, %p56
      %p58 = scmp.ne.s32.totalorder %s50, %s53
      %p59 = scmp.eq.s32.totalorder %s14, 0
      %p60 = por %p58, %p59
      %p61 = scmp.ne.s32.totalorder %s50, %s53
      %p62 = scmp.eq.s32.totalorder %s19, 1
      %p63 = por %p61, %p62
      %p64 = scmp.ne.s32.totalorder %s53, %s54
      %p65 = scmp.eq.s32.totalorder %s19, 0
      %p66 = por %p64, %p65
      %p67 = scmp.ne.s32.totalorder %s53, %s54
      %p68 = scmp.eq.s32.totalorder %s20, 1
      %p69 = por %p67, %p68
      %p71 = scmp.ne.s32.totalorder %s54, %s70
      %p72 = scmp.eq.s32.totalorder %s20, 0
      %p73 = por %p71, %p72
      %s75 = sadd.s32 %s74, 1
      %p78 = scmp.eq.s32.totalorder %s14, 1
      %p79 = scmp.ne.s32.totalorder %s74, %s76
      %p80 = scmp.eq.s32.totalorder %s14, 0
      %p81 = por %p79, %p80
      %p82 = scmp.ne.s32.totalorder %s74, %s76
      %p83 = scmp.eq.s32.totalorder %s19, 1
      %p84 = por %p82, %p83
      %p85 = scmp.ne.s32.totalorder %s76, %s77
      %p86 = scmp.eq.s32.totalorder %s19, 0
      %p87 = por %p85, %p86
      %p88 = scmp.ne.s32.totalorder %s76, %s77
      %p89 = scmp.eq.s32.totalorder %s20, 1
      %p90 = por %p88, %p89
      %p92 = scmp.ne.s32.totalorder %s77, %s91
      %p93 = scmp.eq.s32.totalorder %s20, 0
      %p94 = por %p92, %p93
      %s95 = ssub.s32 %s14, %s21
      %p96 = scmp.eq.s32.totalorder %s95, 0
      %s98 = sadd.s32 %s97, 1
      %s99 = scalar_select %p96, %s97, %s98
      %p102 = pneg %p96
      %p103 = scmp.eq.s32.totalorder %s14, 1
      %p104 = por %p102, %p103
      %p105 = scmp.ne.s32.totalorder %s97, %s100
      %p106 = scmp.eq.s32.totalorder %s14, 0
      %p107 = por %p105, %p106
      %p108 = scmp.ne.s32.totalorder %s97, %s100
      %p109 = scmp.eq.s32.totalorder %s19, 1
      %p110 = por %p108, %p109
      %p111 = scmp.ne.s32.totalorder %s100, %s101
      %p112 = scmp.eq.s32.totalorder %s19, 0
      %p113 = por %p111, %p112
      %p114 = scmp.ne.s32.totalorder %s100, %s101
      %p115 = scmp.eq.s32.totalorder %s20, 1
      %p116 = por %p114, %p115
      %p118 = scmp.ne.s32.totalorder %s101, %s117
      %p119 = scmp.eq.s32.totalorder %s20, 0
      %p120 = por %p118, %p119
      %s121 = ssub.s32 %s14, %s21
      %p122 = scmp.eq.s32.totalorder %s121, 0
      %s124 = sadd.s32 %s123, 1
      %s125 = scalar_select %p122, %s123, %s124
      %p128 = pneg %p122
      %p129 = scmp.eq.s32.totalorder %s14, 1
      %p130 = por %p128, %p129
      %p131 = scmp.ne.s32.totalorder %s123, %s126
      %p132 = scmp.eq.s32.totalorder %s14, 0
      %p133 = por %p131, %p132
      %p134 = scmp.ne.s32.totalorder %s123, %s126
      %p135 = scmp.eq.s32.totalorder %s19, 1
      %p136 = por %p134, %p135
      %p137 = scmp.ne.s32.totalorder %s126, %s127
      %p138 = scmp.eq.s32.totalorder %s19, 0
      %p139 = por %p137, %p138
      %p140 = scmp.ne.s32.totalorder %s126, %s127
      %p141 = scmp.eq.s32.totalorder %s20, 1
      %p142 = por %p140, %p141
      %p144 = scmp.ne.s32.totalorder %s127, %s143
      %p145 = scmp.eq.s32.totalorder %s20, 0
      %p146 = por %p144, %p145
      %p147 = scmp.le.s32.totalorder 1, %s14
      %p148 = scmp.lt.s32.totalorder %s14, 3
      %p149 = pnand %p147, %p148
      %p150 = pneg %p149
      // Predicated region
      $region9: #{multibox_loss.1} parent=5 // pred_check
        _
      $region10: #{multibox_loss.1} parent=5 // pred_check_branch
        %152 = sbr.rel (%p149) target = $region12
      $region11: #{multibox_loss.1} parent=5 // pred_region
        %s153 = ssub.s32 %s14, 1
        // Predicated region
        $region13: #{multibox_loss.1} parent=11 // pred_check
          %p154 = pneg %p87
        $region14: #{multibox_loss.1} parent=11 // pred_check_branch
          %156 = sbr.rel (%p154) target = $region16
        $region15: #{multibox_loss.1} parent=11 // pred_region
          %158 = vsyncadd [#allocation5], 0
          %s160 = sshll.u32 %s2, 4
          %s161 = int_to_ptr.hbm [resolvable:$true] %s160
          %s162 = sshll.u32 [#allocation4], 4
          %s163 = int_to_ptr.vmem [resolvable:$true] %s162
          %165 = dma.hbm_to_vmem [thread:$0]  %s161, 128, %s163, [#allocation5]
        $region16: #{multibox_loss.1} parent=11 // pred_fallthru
          _
      $region12: #{multibox_loss.1} parent=5 // pred_fallthru
        _
      %p166 = scmp.lt.s32.totalorder %s14, 2
      // Predicated region
      $region17: #{multibox_loss.1} parent=5 // pred_check
        %p167 = pneg %p166
      $region18: #{multibox_loss.1} parent=5 // pred_check_branch
        %169 = sbr.rel (%p167) target = $region20
      $region19: #{multibox_loss.1} parent=5 // pred_region
        // Predicated region
        $region21: #{multibox_loss.1} parent=19 // pred_check
          %p170 = pneg %p34
        $region22: #{multibox_loss.1} parent=19 // pred_check_branch
          %172 = sbr.rel (%p170) target = $region24
        $region23: #{multibox_loss.1} parent=19 // pred_region
          %s173 = sand.u32 %s24, 1
          %s174 = scalar_lea.sflag [#allocation3], %s173
          %s175 = sand.u32 %s24, 1
          %s176 = smul.addr %s175, 8
          %s177 = scalar_lea.vmem [#allocation2], %s176
          %179 = vsyncadd %s174, 0
          %s180 = smul.addr %s14, 8
          %s181 = scalar_lea.hbm %s0, %s180
          %s183 = sshll.u32 %s181, 4
          %s184 = int_to_ptr.hbm [resolvable:$true] %s183
          %s185 = sshll.u32 %s177, 4
          %s186 = int_to_ptr.vmem [resolvable:$true] %s185
          %188 = dma.hbm_to_vmem [thread:$0]  %s184, 128, %s186, %s174
        $region24: #{multibox_loss.1} parent=19 // pred_fallthru
          _
        // Predicated region
        $region25: #{multibox_loss.1} parent=19 // pred_check
          %p189 = pneg %p60
        $region26: #{multibox_loss.1} parent=19 // pred_check_branch
          %191 = sbr.rel (%p189) target = $region28
        $region27: #{multibox_loss.1} parent=19 // pred_region
          %p192 = scmp.lt.s32.totalorder %s14, 1
          %s193 = scalar_select %p192, %s14, 1
          %s194 = smul.addr %s193, 4
          %s195 = scalar_lea.vmem %s1, %s194
        $region28: #{multibox_loss.1} parent=19 // pred_fallthru
          _
        // Predicated region
        $region29: #{multibox_loss.1} parent=19 // pred_check
          %p196 = pneg %p107
        $region30: #{multibox_loss.1} parent=19 // pred_check_branch
          %198 = sbr.rel (%p196) target = $region32
        $region31: #{multibox_loss.1} parent=19 // pred_region
          %p199 = scmp.lt.s32.totalorder %s14, 1
          %s200 = scalar_select %p199, %s14, 1
          %s201 = smul.addr %s200, 4
          %s202 = scalar_lea.vmem %s3, %s201
        $region32: #{multibox_loss.1} parent=19 // pred_fallthru
          _
      $region20: #{multibox_loss.1} parent=5 // pred_fallthru
        _
      %p203 = scmp.le.s32.totalorder 1, %s14
      %p204 = scmp.lt.s32.totalorder %s14, 3
      %p205 = pnand %p203, %p204
      %p206 = pneg %p205
      // Predicated region
      $region33: #{multibox_loss.1} parent=5 // pred_check
        _
      $region34: #{multibox_loss.1} parent=5 // pred_check_branch
        %208 = sbr.rel (%p205) target = $region36
      $region35: #{multibox_loss.1} parent=5 // pred_region
        %s209 = ssub.s32 %s14, 1
        %s210 = sand.u32 %s27, 1
        %s211 = scalar_lea.sflag [#allocation3], %s210
        %s212 = sand.u32 %s27, 1
        %s213 = smul.addr %s212, 8
        %s214 = scalar_lea.vmem [#allocation2], %s213
        // Predicated region
        $region37: #{multibox_loss.1} parent=35 // pred_check
          %p215 = pneg %p40
        $region38: #{multibox_loss.1} parent=35 // pred_check_branch
          %217 = sbr.rel (%p215) target = $region40
        $region39: #{multibox_loss.1} parent=35 // pred_region
          %219 = dma.done %s211, 128
        $region40: #{multibox_loss.1} parent=35 // pred_fallthru
          _
        // Predicated region
        $region41: #{multibox_loss.1} parent=35 // pred_check
          %p220 = pneg %p87
        $region42: #{multibox_loss.1} parent=35 // pred_check_branch
          %222 = sbr.rel (%p220) target = $region44
        $region43: #{multibox_loss.1} parent=35 // pred_region
          %224 = dma.done [#allocation5], 128
        $region44: #{multibox_loss.1} parent=35 // pred_fallthru
          _
        %s225 = sand.u32 %s27, 1
        %s226 = scalar_lea.sflag [#allocation3], %s225
        %s227 = sand.u32 %s27, 1
        %s228 = smul.addr %s227, 8
        %s229 = scalar_lea.vmem [#allocation2], %s228
        %p230 = pneg %p40
        %p231 = pneg %p37
        %p232 = scmp.lt.s32.totalorder %s19, 1
        %s233 = scalar_select %p232, %s19, 1
        %s234 = smul.addr %s233, 4
        %s235 = scalar_lea.vmem %s1, %s234
        %p236 = pneg %p66
        %p237 = pneg %p63
        %p238 = pneg %p87
        %p239 = pneg %p84
        %p240 = scmp.lt.s32.totalorder %s19, 1
        %s241 = scalar_select %p240, %s19, 1
        %s242 = smul.addr %s241, 4
        %s243 = scalar_lea.vmem %s3, %s242
        %p244 = pneg %p113
        %p245 = pneg %p110
        %p246 = pneg %p139
        %p247 = pneg %p136
        %p248 = scmp.lt.s32.totalorder %s19, 1
        %s249 = scalar_select %p248, %s19, 1
        %s250 = smul.addr %s249, 8
        %s251 = scalar_lea.vmem %s4, %s250
        %p252 = scmp.lt.s32.totalorder %s19, 1
        %s253 = scalar_select %p252, %s19, 1
        %s254 = smul.addr %s253, 4
        %s255 = scalar_lea.vmem %s1, %s254
        %p256 = scmp.lt.s32.totalorder %s19, 1
        %s257 = scalar_select %p256, %s19, 1
        %s258 = smul.addr %s257, 4
        %s259 = scalar_lea.vmem %s3, %s258
        %p260 = scmp.lt.s32.totalorder %s19, 1
        %s261 = scalar_select %p260, %s19, 1
        %s262 = smul.addr %s261, 8
        %s263 = scalar_lea.vmem %s4, %s262
        %v265 = vld [vmem:[#allocation4] sm:$0xff]
        %v266 = vld [vmem:[%s259] sm:$0x7]
        %v267 = vcvt.f32.s32.to.zero.pseudo %v266
        %vm268 = vcmp.ge.s32.totalorder %v267, 0
        %270 = vset.pattern.permute.xlu0 2
        %271 = vperm.xlu0 %270, %v266
        %v272 = vpop.permute.xlu0 %271
        %v274 = vperm.slane %v265, 6
        %v275 = vmin.f32 %v272, %v274
        %276 = vset.pattern.permute.xlu0 0
        %277 = vperm.xlu0 %276, %v266
        %v278 = vpop.permute.xlu0 %277
        %v280 = vperm.slane %v265, 4
        %v281 = vmax.f32 %v278, %v280
        %v282 = vsub.f32 %v275, %v281
        %v283 = vmax.f32 %v282, 0.0
        %284 = vset.pattern.permute.xlu0 3
        %285 = vperm.xlu0 %284, %v266
        %v286 = vpop.permute.xlu0 %285
        %v288 = vperm.slane %v265, 7
        %v289 = vmin.f32 %v286, %v288
        %290 = vset.pattern.permute.xlu0 1
        %291 = vperm.xlu0 %290, %v266
        %v292 = vpop.permute.xlu0 %291
        %v294 = vperm.slane %v265, 5
        %v295 = vmax.f32 %v292, %v294
        %v296 = vsub.f32 %v289, %v295
        %v297 = vmax.f32 %v296, 0.0
        %v298 = vmul.f32 %v283, %v297
        %299 = vrot.lane.b32.xlu0 %v266, 2
        %v300 = vpop.permute.xlu0 %299
        %v302 = vsub.f32 %v266, %v300
        %304 = vrot.lane.b32.xlu0 %v302, 127
        %v305 = vpop.permute.xlu0 %304
        %v307 = vmul.f32 %v302, %v305
        %v309 = vrot.slane %v265, 6
        %v311 = vsub.f32 %v265, %v309
        %v313 = vrot.slane %v311, 1
        %v315 = vmul.f32 %v311, %v313
        %317 = vset.pattern.permute.xlu0 2
        %318 = vperm.xlu0 %317, %v307
        %v319 = vpop.permute.xlu0 %318
        %v321 = vperm.slane %v315, 6
        %v322 = vadd.f32 %v319, %v321
        %v323 = vsub.f32 %v322, %v298
        %v324 = vrcp.pop %v323
        %v325 = vmul.f32 %v323, %v324
        %v326 = vsub.f32 1.0, %v325
        %v327 = vmul.f32 %v324, %v326
        %v328 = vadd.f32 %v324, %v327
        %vm329 = vweird.f32 %v323
        %vm330 = vweird.f32 %v324
        %vm331 = vmor %vm329, %vm330
        %v332 = vsel %vm331, %v324, %v328
        %v333 = vand.u32 2147483647, %v323
        %vm334 = vcmp.eq.f32.partialorder %v333, 8.507059e+37
        %v335 = vand.u32 %v323, 2147483648
        %v336 = vor.u32 1.1754944e-38, %v335
        %v337 = vsel %vm334, %v336, %v332
        %v338 = vmul.f32 %v298, %v337
        %v339 = vsel %vm268, 1, 0
        %340 = vset.pattern.permute.xlu0 4
        %341 = vperm.xlu0 %340, %v339
        %v342 = vpop.permute.xlu0 %341
        %vm343 = vcmp.eq.s32.totalorder %v342, 1
        %v344 = vsel %vm343, %v338, -1.0
        %v345 = vlaneseq
        %v346 = vand.u32 %v345, 127
        %v347 = vlaneseq
        %v348 = vshrl.u32 %v347, 7
        %vm349 = vcmask 1042432
        %v350 = vsel %vm349, %v344, -inf
        %351 = vmax.xlane.f32.xlu0 %v350
        %v352 = vpop.xlane.xlu0 %351
        %vm353 = vcmp.eq.f32.partialorder %v344, %v352
        %v354 = vsel %vm353, %v346, 128
        %v355 = vsel %vm349, %v354, 2147483647
        %v356 = vand.u32 %v355, 65535
        %v357 = vshra.s32 %v355, 16
        %v358 = vcvt.s32.f32 %v356
        %v359 = vcvt.s32.f32 %v357
        %360 = vmin.xlane.f32.xlu0 %v359
        %v361 = vpop.xlane.xlu0 %360
        %vm362 = vcmp.eq.f32.partialorder %v359, %v361
        %v363 = vsel %vm362, %v358, inf
        %364 = vmin.xlane.f32.xlu0 %v363
        %v365 = vpop.xlane.xlu0 %364
        %v366 = vcvt.f32.s32 %v365
        %v367 = vcvt.f32.s32 %v361
        %v368 = vshll.u32 %v367, 16
        %v369 = vadd.s32 %v368, %v366
        %v370 = vrot.slane %v350, 4
        %v371 = vmax.f32 %v350, %v370
        %v372 = vrot.slane %v371, 2
        %v373 = vmax.f32 %v371, %v372
        %v374 = vrot.slane %v373, 1
        %v375 = vmax.f32 %v373, %v374
        %vm376 = vcmp.eq.f32.partialorder %v344, %v375
        %v377 = vsel %vm376, %v348, 3
        %v378 = vsel %vm349, %v377, 2147483647
        %v379 = vrot.slane %v378, 4
        %vm380 = vcmp.lt.s32.totalorder %v378, %v379
        %v381 = vsel %vm380, %v378, %v379
        %v382 = vrot.slane %v381, 2
        %vm383 = vcmp.lt.s32.totalorder %v381, %v382
        %v384 = vsel %vm383, %v381, %v382
        %v385 = vrot.slane %v384, 1
        %vm386 = vcmp.lt.s32.totalorder %v384, %v385
        %v387 = vsel %vm386, %v384, %v385
        %vm388 = vcmp.eq.s32.totalorder %v369, %v346
        %vm389 = vmand %vm388, %vm343
        %v390 = vsel %vm389, %v348, 4294967295
        %v391 = vsel %vm349, %v390, 2147483648
        %v392 = vrot.slane %v391, 4
        %vm393 = vcmp.gt.s32.totalorder %v391, %v392
        %v394 = vsel %vm393, %v391, %v392
        %v395 = vrot.slane %v394, 2
        %vm396 = vcmp.gt.s32.totalorder %v394, %v395
        %v397 = vsel %vm396, %v394, %v395
        %v398 = vrot.slane %v397, 1
        %vm399 = vcmp.gt.s32.totalorder %v397, %v398
        %v400 = vsel %vm399, %v397, %v398
        %vm401 = vcmp.ge.s32.totalorder %v400, 0
        %v402 = vsel %vm401, %v400, %v387
        %v403 = vsel %vm401, 2.0, %v375
        %vm404 = vcmp.eq.s32.totalorder %v402, %v348
        %v405 = vsel %vm404, 1, 0
        %v406 = vcvt.s32.f32 %v405
        %v407 = vmul.f32 %v406, %v278
        %v408 = vsel %vm349, %v407, 0.0
        %v409 = vrot.slane %v408, 4
        %v410 = vadd.f32 %v408, %v409
        %v411 = vrot.slane %v410, 2
        %v412 = vadd.f32 %v410, %v411
        %v413 = vrot.slane %v412, 1
        %v414 = vadd.f32 %v412, %v413
        %v415 = vmul.f32 %v406, %v292
        %v416 = vsel %vm349, %v415, 0.0
        %v417 = vrot.slane %v416, 4
        %v418 = vadd.f32 %v416, %v417
        %v419 = vrot.slane %v418, 2
        %v420 = vadd.f32 %v418, %v419
        %v421 = vrot.slane %v420, 1
        %v422 = vadd.f32 %v420, %v421
        %v423 = vmul.f32 %v406, %v272
        %v424 = vsel %vm349, %v423, 0.0
        %v425 = vrot.slane %v424, 4
        %v426 = vadd.f32 %v424, %v425
        %v427 = vrot.slane %v426, 2
        %v428 = vadd.f32 %v426, %v427
        %v429 = vrot.slane %v428, 1
        %v430 = vadd.f32 %v428, %v429
        %v431 = vmul.f32 %v406, %v286
        %v432 = vsel %vm349, %v431, 0.0
        %v433 = vrot.slane %v432, 4
        %v434 = vadd.f32 %v432, %v433
        %v435 = vrot.slane %v434, 2
        %v436 = vadd.f32 %v434, %v435
        %v437 = vrot.slane %v436, 1
        %v438 = vadd.f32 %v436, %v437
        %v439 = vadd.s32 %v267, 1
        %440 = vset.pattern.permute.xlu0 4
        %441 = vperm.xlu0 %440, %v439
        %v442 = vpop.permute.xlu0 %441
        %v443 = vsel %vm404, %v442, 0
        %v444 = vsel %vm349, %v443, 0
        %v445 = vrot.slane %v444, 4
        %v446 = vadd.s32 %v444, %v445
        %v447 = vrot.slane %v446, 2
        %v448 = vadd.s32 %v446, %v447
        %v449 = vrot.slane %v448, 1
        %v450 = vadd.s32 %v448, %v449
        %vm451 = vcmp.lt.f32.partialorder %v403, 0.5
        %v452 = vsel %vm451, 0, %v450
        %vm453 = vcmp.gt.s32.totalorder %v452, 0
        %v454 = vsel %vm453, 1, 0
        %v455 = vcvt.s32.f32 %v454
        %456 = vadd.xlane.f32.xlu0 %v455
        %v457 = vpop.xlane.xlu0 %456
        %s458 = vtos %v457
        %v459 = vld [vmem:[%s214] sm:$0xff]
        %v460 = vrot.slane %v459, 4
        %v461 = vmax.f32 %v459, %v460
        %v462 = vrot.slane %v461, 2
        %v463 = vmax.f32 %v461, %v462
        %v464 = vrot.slane %v463, 1
        %v465 = vmax.f32 %v463, %v464
        %v466 = vsub.f32 %v459, %v465
        %v467 = vmul.f32 %v466, 1.442695
        %v468 = vpow.pop %v467
        %v469 = vrot.slane %v468, 4
        %v470 = vadd.f32 %v468, %v469
        %v471 = vrot.slane %v470, 2
        %v472 = vadd.f32 %v470, %v471
        %v473 = vrot.slane %v472, 1
        %v474 = vadd.f32 %v472, %v473
        %v475 = vlog2.pop %v474
        %v476 = vmul.f32 %v475, 0.6931472
        %v477 = vadd.f32 %v476, %v465
        %vm478 = vcmp.eq.s32.totalorder %v348, %v452
        %v479 = vsel %vm478, %v459, 0.0
        %v480 = vrot.slane %v479, 4
        %v481 = vadd.f32 %v479, %v480
        %v482 = vrot.slane %v481, 2
        %v483 = vadd.f32 %v481, %v482
        %v484 = vrot.slane %v483, 1
        %v485 = vadd.f32 %v483, %v484
        %v486 = vsub.f32 %v477, %v485
        %v487 = vsel %vm453, 0.0, %v486
        %v488 = vlaneseq
        %v489 = vshrl.u32 %v488, 7
        %491 = vset.pattern.permute.xlu0 %v489
        %492 = vperm.xlu0 %491, %v487
        %v493 = vpop.permute.xlu0 %492
        %v494 = vlaneseq
        %v495 = vshrl.u32 %v494, 7
        %v496 = vadd.s32 %v495, 8
        %497 = vset.pattern.permute.xlu0 %v496
        %498 = vperm.xlu0 %497, %v487
        %v499 = vpop.permute.xlu0 %498
        %v500 = vlaneseq
        %v501 = vshrl.u32 %v500, 7
        %v502 = vadd.s32 %v501, 16
        %503 = vset.pattern.permute.xlu0 %v502
        %504 = vperm.xlu0 %503, %v487
        %v505 = vpop.permute.xlu0 %504
        %v506 = vlaneseq
        %v507 = vshrl.u32 %v506, 7
        %v508 = vadd.s32 %v507, 24
        %509 = vset.pattern.permute.xlu0 %v508
        %510 = vperm.xlu0 %509, %v487
        %v511 = vpop.permute.xlu0 %510
        %v512 = vlaneseq
        %v513 = vshrl.u32 %v512, 7
        %v514 = vadd.s32 %v513, 32
        %515 = vset.pattern.permute.xlu0 %v514
        %516 = vperm.xlu0 %515, %v487
        %v517 = vpop.permute.xlu0 %516
        %v518 = vlaneseq
        %v519 = vshrl.u32 %v518, 7
        %v520 = vadd.s32 %v519, 40
        %521 = vset.pattern.permute.xlu0 %v520
        %522 = vperm.xlu0 %521, %v487
        %v523 = vpop.permute.xlu0 %522
        %v524 = vlaneseq
        %v525 = vshrl.u32 %v524, 7
        %v526 = vadd.s32 %v525, 48
        %527 = vset.pattern.permute.xlu0 %v526
        %528 = vperm.xlu0 %527, %v487
        %v529 = vpop.permute.xlu0 %528
        %v530 = vlaneseq
        %v531 = vshrl.u32 %v530, 7
        %v532 = vadd.s32 %v531, 56
        %533 = vset.pattern.permute.xlu0 %v532
        %534 = vperm.xlu0 %533, %v487
        %v535 = vpop.permute.xlu0 %534
        %v536 = vlaneseq
        %v537 = vshrl.u32 %v536, 7
        %v538 = vadd.s32 %v537, 64
        %539 = vset.pattern.permute.xlu0 %v538
        %540 = vperm.xlu0 %539, %v487
        %v541 = vpop.permute.xlu0 %540
        %v542 = vlaneseq
        %v543 = vshrl.u32 %v542, 7
        %v544 = vadd.s32 %v543, 72
        %545 = vset.pattern.permute.xlu0 %v544
        %546 = vperm.xlu0 %545, %v487
        %v547 = vpop.permute.xlu0 %546
        %v548 = vlaneseq
        %v549 = vshrl.u32 %v548, 7
        %v550 = vadd.s32 %v549, 80
        %551 = vset.pattern.permute.xlu0 %v550
        %552 = vperm.xlu0 %551, %v487
        %v553 = vpop.permute.xlu0 %552
        %v554 = vlaneseq
        %v555 = vshrl.u32 %v554, 7
        %v556 = vadd.s32 %v555, 88
        %557 = vset.pattern.permute.xlu0 %v556
        %558 = vperm.xlu0 %557, %v487
        %v559 = vpop.permute.xlu0 %558
        %v560 = vlaneseq
        %v561 = vshrl.u32 %v560, 7
        %v562 = vadd.s32 %v561, 96
        %563 = vset.pattern.permute.xlu0 %v562
        %564 = vperm.xlu0 %563, %v487
        %v565 = vpop.permute.xlu0 %564
        %v566 = vlaneseq
        %v567 = vshrl.u32 %v566, 7
        %v568 = vadd.s32 %v567, 104
        %569 = vset.pattern.permute.xlu0 %v568
        %570 = vperm.xlu0 %569, %v487
        %v571 = vpop.permute.xlu0 %570
        %v572 = vlaneseq
        %v573 = vshrl.u32 %v572, 7
        %v574 = vadd.s32 %v573, 112
        %575 = vset.pattern.permute.xlu0 %v574
        %576 = vperm.xlu0 %575, %v487
        %v577 = vpop.permute.xlu0 %576
        %v578 = vlaneseq
        %v579 = vshrl.u32 %v578, 7
        %v580 = vadd.s32 %v579, 120
        %581 = vset.pattern.permute.xlu0 %v580
        %582 = vperm.xlu0 %581, %v487
        %v583 = vpop.permute.xlu0 %582
        %v584 = vadd.s32 %v348, 8
        %v585 = vadd.s32 %v348, 16
        %v586 = vadd.s32 %v348, 24
        %v587 = vadd.s32 %v348, 32
        %v588 = vadd.s32 %v348, 40
        %v589 = vadd.s32 %v348, 48
        %v590 = vadd.s32 %v348, 56
        %v591 = vadd.s32 %v348, 64
        %v592 = vadd.s32 %v348, 72
        %v593 = vadd.s32 %v348, 80
        %v594 = vadd.s32 %v348, 88
        %v595 = vadd.s32 %v348, 96
        %v596 = vadd.s32 %v348, 104
        %v597 = vadd.s32 %v348, 112
        %v598 = vadd.s32 %v348, 120
        %vm599 = vcmp.gt.f32.partialorder %v493, %v487
        %vm600 = vcmp.gt.f32.partialorder %v499, %v487
        %vm601 = vcmp.gt.f32.partialorder %v505, %v487
        %vm602 = vcmp.gt.f32.partialorder %v511, %v487
        %vm603 = vcmp.gt.f32.partialorder %v517, %v487
        %vm604 = vcmp.gt.f32.partialorder %v523, %v487
        %vm605 = vcmp.gt.f32.partialorder %v529, %v487
        %vm606 = vcmp.gt.f32.partialorder %v535, %v487
        %vm607 = vcmp.gt.f32.partialorder %v541, %v487
        %vm608 = vcmp.gt.f32.partialorder %v547, %v487
        %vm609 = vcmp.gt.f32.partialorder %v553, %v487
        %vm610 = vcmp.gt.f32.partialorder %v559, %v487
        %vm611 = vcmp.gt.f32.partialorder %v565, %v487
        %vm612 = vcmp.gt.f32.partialorder %v571, %v487
        %vm613 = vcmp.gt.f32.partialorder %v577, %v487
        %vm614 = vcmp.gt.f32.partialorder %v583, %v487
        %vm615 = vcmp.eq.f32.partialorder %v493, %v487
        %vm616 = vcmp.eq.f32.partialorder %v499, %v487
        %vm617 = vcmp.eq.f32.partialorder %v505, %v487
        %vm618 = vcmp.eq.f32.partialorder %v511, %v487
        %vm619 = vcmp.eq.f32.partialorder %v517, %v487
        %vm620 = vcmp.eq.f32.partialorder %v523, %v487
        %vm621 = vcmp.eq.f32.partialorder %v529, %v487
        %vm622 = vcmp.eq.f32.partialorder %v535, %v487
        %vm623 = vcmp.eq.f32.partialorder %v541, %v487
        %vm624 = vcmp.eq.f32.partialorder %v547, %v487
        %vm625 = vcmp.eq.f32.partialorder %v553, %v487
        %vm626 = vcmp.eq.f32.partialorder %v559, %v487
        %vm627 = vcmp.eq.f32.partialorder %v565, %v487
        %vm628 = vcmp.eq.f32.partialorder %v571, %v487
        %vm629 = vcmp.eq.f32.partialorder %v577, %v487
        %vm630 = vcmp.eq.f32.partialorder %v583, %v487
        %vm631 = vcmp.lt.s32.totalorder %v348, %v346
        %vm632 = vcmp.lt.s32.totalorder %v584, %v346
        %vm633 = vcmp.lt.s32.totalorder %v585, %v346
        %vm634 = vcmp.lt.s32.totalorder %v586, %v346
        %vm635 = vcmp.lt.s32.totalorder %v587, %v346
        %vm636 = vcmp.lt.s32.totalorder %v588, %v346
        %vm637 = vcmp.lt.s32.totalorder %v589, %v346
        %vm638 = vcmp.lt.s32.totalorder %v590, %v346
        %vm639 = vcmp.lt.s32.totalorder %v591, %v346
        %vm640 = vcmp.lt.s32.totalorder %v592, %v346
        %vm641 = vcmp.lt.s32.totalorder %v593, %v346
        %vm642 = vcmp.lt.s32.totalorder %v594, %v346
        %vm643 = vcmp.lt.s32.totalorder %v595, %v346
        %vm644 = vcmp.lt.s32.totalorder %v596, %v346
        %vm645 = vcmp.lt.s32.totalorder %v597, %v346
        %vm646 = vcmp.lt.s32.totalorder %v598, %v346
        %vm647 = vmand %vm615, %vm631
        %vm648 = vmand %vm616, %vm632
        %vm649 = vmand %vm617, %vm633
        %vm650 = vmand %vm618, %vm634
        %vm651 = vmand %vm619, %vm635
        %vm652 = vmand %vm620, %vm636
        %vm653 = vmand %vm621, %vm637
        %vm654 = vmand %vm622, %vm638
        %vm655 = vmand %vm623, %vm639
        %vm656 = vmand %vm624, %vm640
        %vm657 = vmand %vm625, %vm641
        %vm658 = vmand %vm626, %vm642
        %vm659 = vmand %vm627, %vm643
        %vm660 = vmand %vm628, %vm644
        %vm661 = vmand %vm629, %vm645
        %vm662 = vmand %vm630, %vm646
        %vm663 = vmor %vm599, %vm647
        %vm664 = vmor %vm600, %vm648
        %vm665 = vmor %vm601, %vm649
        %vm666 = vmor %vm602, %vm650
        %vm667 = vmor %vm603, %vm651
        %vm668 = vmor %vm604, %vm652
        %vm669 = vmor %vm605, %vm653
        %vm670 = vmor %vm606, %vm654
        %vm671 = vmor %vm607, %vm655
        %vm672 = vmor %vm608, %vm656
        %vm673 = vmor %vm609, %vm657
        %vm674 = vmor %vm610, %vm658
        %vm675 = vmor %vm611, %vm659
        %vm676 = vmor %vm612, %vm660
        %vm677 = vmor %vm613, %vm661
        %vm678 = vmor %vm614, %vm662
        %v679 = vsel %vm663, 1, 0
        %v680 = vsel %vm664, 1, 0
        %v681 = vsel %vm665, 1, 0
        %v682 = vsel %vm666, 1, 0
        %v683 = vsel %vm667, 1, 0
        %v684 = vsel %vm668, 1, 0
        %v685 = vsel %vm669, 1, 0
        %v686 = vsel %vm670, 1, 0
        %v687 = vsel %vm671, 1, 0
        %v688 = vsel %vm672, 1, 0
        %v689 = vsel %vm673, 1, 0
        %v690 = vsel %vm674, 1, 0
        %v691 = vsel %vm675, 1, 0
        %v692 = vsel %vm676, 1, 0
        %v693 = vsel %vm677, 1, 0
        %v694 = vsel %vm678, 1, 0
        %v695 = vcvt.s32.f32 %v679
        %v696 = vcvt.s32.f32 %v680
        %v697 = vcvt.s32.f32 %v681
        %v698 = vcvt.s32.f32 %v682
        %v699 = vcvt.s32.f32 %v683
        %v700 = vcvt.s32.f32 %v684
        %v701 = vcvt.s32.f32 %v685
        %v702 = vcvt.s32.f32 %v686
        %v703 = vcvt.s32.f32 %v687
        %v704 = vcvt.s32.f32 %v688
        %v705 = vcvt.s32.f32 %v689
        %v706 = vcvt.s32.f32 %v690
        %v707 = vcvt.s32.f32 %v691
        %v708 = vcvt.s32.f32 %v692
        %v709 = vcvt.s32.f32 %v693
        %v710 = vcvt.s32.f32 %v694
        %v711 = vpack.c.bf16 %v696, %v695
        %v712 = vpack.c.bf16 %v698, %v697
        %v713 = vpack.c.bf16 %v700, %v699
        %v714 = vpack.c.bf16 %v702, %v701
        %v715 = vpack.c.bf16 %v704, %v703
        %v716 = vpack.c.bf16 %v706, %v705
        %v717 = vpack.c.bf16 %v708, %v707
        %v718 = vpack.c.bf16 %v710, %v709
        %719 = vmatpush.bf16.msra.mxu0 %v718
        %720 = vmatpush.bf16.msra.mxu0 %v717
        %721 = vmatpush.bf16.msra.mxu0 %v716
        %722 = vmatpush.bf16.msra.mxu0 %v715
        %723 = vmatpush.bf16.msra.mxu0 %v714
        %724 = vmatpush.bf16.msra.mxu0 %v713
        %725 = vmatpush.bf16.msra.mxu0 %v712
        %726 = vmatpush.bf16.msra.mxu0 %v711
        %727 = vmatmul.bf16.gmra.mxu0 1065369472
        %v728 = vpop.f32.mrf.mxu0
        %v729 = vadd.f32 0.0, %v728
        %v730 = vpop.f32.mrf.mxu0
        %731 = vdwg.mxu0
        %s732 = smul.f32 %s458, 3.0
        %s733 = smin.f32 %s732, 127.0
        %v734 = vstv %s733
        %vm735 = vcmp.lt.f32.partialorder %v729, %v734
        %vm736 = vmor %vm453, %vm735
        %v737 = vsel %vm736, %v486, 0.0
        %vm738 = vcmask 1040384
        %v739 = vsel %vm738, %v737, 0.0
        %740 = vadd.xlane.f32.xlu0 %v739
        %v741 = vpop.xlane.xlu0 %740
        %s742 = vtos %v741
        %v743 = vld [vmem:[%s255] sm:$0xf]
        %v744 = vmul.f32 %v743, 0.1
        %v745 = vrot.slane %v265, 2
        %v747 = vmul.f32 %v744, %v745
        %v748 = vadd.f32 %v265, %v747
        %v749 = vmul.f32 %v743, 0.2
        %v750 = vmul.f32 %v749, 1.442695
        %v751 = vpow.pop %v750
        %v752 = vmul.f32 %v265, %v751
        %v753 = vmul.f32 %v752, 0.5
        %v755 = vrot.slane %v753, 2
        %v757 = vsub.f32 %v748, %v755
        %v759 = vrot.slane %v752, 2
        %v761 = vadd.f32 %v757, %v759
        %v762 = vsub.f32 %v761, %v757
        %v764 = vrot.slane %v762, 1
        %v766 = vmul.f32 %v762, %v764
        %v767 = vsub.f32 %v430, %v414
        %v768 = vsub.f32 %v438, %v422
        %v769 = vmul.f32 %v767, %v768
        %v770 = vmin.f32 %v761, %v430
        %v771 = vmax.f32 %v757, %v414
        %v772 = vsub.f32 %v770, %v771
        %v773 = vmax.f32 %v772, 0.0
        %v774 = vmin.f32 %v761, %v438
        %v775 = vmax.f32 %v757, %v422
        %v776 = vsub.f32 %v774, %v775
        %v777 = vmax.f32 %v776, 0.0
        %v779 = vrot.slane %v777, 1
        %v781 = vmul.f32 %v773, %v779
        %v782 = vmax.f32 %v761, %v430
        %v783 = vmin.f32 %v757, %v414
        %v784 = vsub.f32 %v782, %v783
        %v785 = vmax.f32 %v784, 0.0
        %v786 = vmax.f32 %v761, %v438
        %v787 = vmin.f32 %v757, %v422
        %v788 = vsub.f32 %v786, %v787
        %v789 = vmax.f32 %v788, 0.0
        %v791 = vrot.slane %v789, 1
        %v793 = vmul.f32 %v785, %v791
        %v794 = vadd.f32 %v766, %v769
        %v795 = vsub.f32 %v794, %v781
        %v796 = vrcp.pop %v795
        %v797 = vmul.f32 %v795, %v796
        %v798 = vsub.f32 1.0, %v797
        %v799 = vmul.f32 %v796, %v798
        %v800 = vadd.f32 %v796, %v799
        %vm801 = vweird.f32 %v795
        %vm802 = vweird.f32 %v796
        %vm803 = vmor %vm801, %vm802
        %v804 = vsel %vm803, %v796, %v800
        %v805 = vand.u32 2147483647, %v795
        %vm806 = vcmp.eq.f32.partialorder %v805, 8.507059e+37
        %v807 = vand.u32 %v795, 2147483648
        %v808 = vor.u32 1.1754944e-38, %v807
        %v809 = vsel %vm806, %v808, %v804
        %v810 = vmul.f32 %v781, %v809
        %v811 = vsub.f32 %v793, %v795
        %v812 = vrcp.pop %v793
        %v813 = vmul.f32 %v793, %v812
        %v814 = vsub.f32 1.0, %v813
        %v815 = vmul.f32 %v812, %v814
        %v816 = vadd.f32 %v812, %v815
        %vm817 = vweird.f32 %v793
        %vm818 = vweird.f32 %v812
        %vm819 = vmor %vm817, %vm818
        %v820 = vsel %vm819, %v812, %v816
        %v821 = vand.u32 2147483647, %v793
        %vm822 = vcmp.eq.f32.partialorder %v821, 8.507059e+37
        %v823 = vand.u32 %v793, 2147483648
        %v824 = vor.u32 1.1754944e-38, %v823
        %v825 = vsel %vm822, %v824, %v820
        %v826 = vmul.f32 %v811, %v825
        %v827 = vsub.f32 %v810, %v826
        %v828 = vmax.f32 %v827, -1.0
        %v829 = vmin.f32 %v828, 1.0
        %v830 = vsub.f32 1.0, %v829
        %v831 = vsel %vm453, %v830, 0.0
        %v832 = vsel %vm738, %v831, 0.0
        %833 = vadd.xlane.f32.xlu0 %v832
        %v834 = vpop.xlane.xlu0 %833
        %s835 = vtos %v834
        %s836 = smul.f32 %s835, 5.0
        %vm837 = vcmp.eq.s32.totalorder %v346, 0
        %vm838 = vcmp.eq.s32.totalorder %v346, 1
        %vm839 = vcmp.eq.s32.totalorder %v346, 2
        %v840 = vstv %s458
        %v841 = vsel %vm839, %v840, 0.0
        %v842 = vstv %s742
        %v843 = vsel %vm838, %v842, %v841
        %v844 = vstv %s836
        %v845 = vsel %vm837, %v844, %v843
        %846 = vst [vmem:[%s263] sm:$0xff] %v845
        %p847 = scmp.lt.s32.totalorder %s19, 1
        %s848 = scalar_select %p847, %s19, 1
        %s849 = smul.addr %s848, 8
        %s850 = scalar_lea.vmem %s4, %s849
        // Predicated region
        $region45: #{multibox_loss.1} parent=35 // pred_check
          %p851 = pneg %p136
        $region46: #{multibox_loss.1} parent=35 // pred_check_branch
          %853 = sbr.rel (%p851) target = $region48
        $region47: #{multibox_loss.1} parent=35 // pred_region
          _
        $region48: #{multibox_loss.1} parent=35 // pred_fallthru
          _
      $region36: #{multibox_loss.1} parent=5 // pred_fallthru
        _
      %p854 = scmp.le.s32.totalorder 2, %s14
      // Predicated region
      $region49: #{multibox_loss.1} parent=5 // pred_check
        %p855 = pneg %p854
      $region50: #{multibox_loss.1} parent=5 // pred_check_branch
        %857 = sbr.rel (%p855) target = $region52
      $region51: #{multibox_loss.1} parent=5 // pred_region
        %s858 = ssub.s32 %s14, 2
        // Predicated region
        $region53: #{multibox_loss.1} parent=51 // pred_check
          %p859 = pneg %p142
        $region54: #{multibox_loss.1} parent=51 // pred_check_branch
          %861 = sbr.rel (%p859) target = $region56
        $region55: #{multibox_loss.1} parent=51 // pred_region
          %p862 = scmp.lt.s32.totalorder %s20, 1
          %s863 = scalar_select %p862, %s20, 1
          %s864 = smul.addr %s863, 8
          %s865 = scalar_lea.vmem %s4, %s864
        $region56: #{multibox_loss.1} parent=51 // pred_fallthru
          _
      $region52: #{multibox_loss.1} parent=5 // pred_fallthru
        _
    $region6: #{multibox_loss.1} parent=1 // loop_footer
      %s18 = sadd.s32 1, %s14
    $region7: #{multibox_loss.1} parent=1 // loop_footer_branch
      %13 = sbr.rel target = $region3
    $region8: #{multibox_loss.1} parent=1 // loop_exit
      _
    %866 = vsyncpa [#allocation3], 1
    %s867 = scalar_lea.sflag [#allocation3], 1
    %868 = vsyncpa %s867, 1
    %869 = vsyncpa [#allocation5], 1

</llo_original>
